<compile_context>
chip_gen: v7x
topology: tpu7x:2x2x1
jax: 0.10.0
libtpu: 0.0.40
codegen_flags: <defaults>
</compile_context>

<pallas_src>
import functools

import jax
import jax.numpy as jnp
from jax import lax
from jax.experimental import pallas as pl
from jax.experimental.pallas import tpu as pltpu


def _round_up(x, m):
    return ((x + m - 1) // m) * m


def _vmem_limit_bytes(frac=0.80):
    """~80% of the chip's physical VMEM (128 MiB on v5e/v6e, 64 MiB on v7x)."""
    cap = 128 * 1024 * 1024
    try:
        info = pltpu.get_tpu_info()
        cap = int(getattr(info, "vmem_capacity_bytes", cap))
    except Exception:
        pass
    return int(cap * frac)


def _hidden_tiling(hidden, max_tile_h=512):
    """Pick a 128-multiple hidden tile and the padded hidden size."""
    hid_128 = _round_up(hidden, 128)
    if hid_128 <= max_tile_h:
        return hid_128, hid_128
    n_tiles = pl.cdiv(hid_128, max_tile_h)
    tile_h = _round_up(pl.cdiv(hid_128, n_tiles), 128)
    return tile_h, tile_h * n_tiles


def _batch_tiling(batch):
    """16-aligned batch tile giving >=2 grid steps (>=4 for larger batches)."""
    target_tiles = max(2, pl.cdiv(batch, 256))
    if batch >= 512:
        target_tiles = max(4, target_tiles)
    tile_b = max(16, _round_up(pl.cdiv(batch, target_tiles), 16))
    return tile_b, _round_up(batch, tile_b)


def _sub_chunking(tile_b):
    """Split the batch tile into sub-chunks to overlap MXU and VPU work."""
    sub_b = tile_b
    for cand in (128, 64, 32):
        if tile_b % cand == 0 and tile_b > cand:
            sub_b = cand
            break
    return tile_b // sub_b, sub_b


def _mlp_kernel(alpha_ref, x_ref, w1_ref, b1_ref, w2_ref, b2_ref, o_ref,
                acc_ref, *, n_sub, sub_b):
    j = pl.program_id(1)

    @pl.when(j == 0)
    def _init():
        acc_ref[...] = jnp.zeros_like(acc_ref)

    alpha = alpha_ref[0]                 # shared PReLU scalar from SMEM
    w1 = w1_ref[...]                     # (in, tile_h)  bf16
    b1 = b1_ref[...]                     # (1, tile_h)   f32
    w2 = w2_ref[...]                     # (tile_h, out) bf16

    def sub_step(c, carry):
        r0 = pl.multiple_of(c * sub_b, sub_b)
        # Cast the activation tile to bf16 in-kernel (no wrapper-side copy).
        xs = x_ref[pl.ds(r0, sub_b), :].astype(jnp.bfloat16)
        h = jnp.dot(xs, w1, preferred_element_type=jnp.float32) + b1
        h = jnp.where(h > 0, h, alpha * h)            # PReLU (f32)
        acc_ref[pl.ds(r0, sub_b), :] += jnp.dot(
            h.astype(jnp.bfloat16), w2, preferred_element_type=jnp.float32)
        return carry

    lax.fori_loop(0, n_sub, sub_step, 0, unroll=True)

    @pl.when(j == pl.num_programs(1) - 1)
    def _finalize():
        o_ref[...] = (acc_ref[...] + b2_ref[...]).astype(o_ref.dtype)


def prepare_mlp_params(w1, b1, w2, b2, alpha):
    """One-time prep: pad hidden to the tile multiple and cast weights to bf16.

    w1: (in, hidden); b1: (hidden,); w2: (hidden, out); b2: (out,); alpha scalar.
    """
    in_size, hidden = w1.shape
    out_size = w2.shape[1]
    tile_h, hid_p = _hidden_tiling(hidden)
    pad_h = hid_p - hidden
    return dict(
        w1=jnp.pad(w1, ((0, 0), (0, pad_h))).astype(jnp.bfloat16),
        b1=jnp.pad(b1, (0, pad_h)).reshape(1, hid_p).astype(jnp.float32),
        w2=jnp.pad(w2, ((0, pad_h), (0, 0))).astype(jnp.bfloat16),
        b2=jnp.asarray(b2, jnp.float32).reshape(1, out_size),
        alpha=jnp.asarray(alpha, jnp.float32).reshape(1),
        in_size=in_size, hidden=hidden, out_size=out_size,
        hid_p=hid_p, tile_h=tile_h,
    )


def mlp_forward(x, params, out_dtype=jnp.float32):
    """x: (B, in) -> (B, out). Pass out_dtype=jnp.bfloat16 to halve the output write."""
    B, in_size = x.shape
    assert in_size == params["in_size"]
    out_size = params["out_size"]
    hid_p, tile_h = params["hid_p"], params["tile_h"]

    tile_b, B_p = _batch_tiling(B)
    n_sub, sub_b = _sub_chunking(tile_b)

    # Only the batch dim of x is ever padded (and only when necessary).
    x_in = x if B_p == B else jnp.pad(x, ((0, B_p - B), (0, 0)))

    grid = (B_p // tile_b, hid_p // tile_h)

    flops = 2 * B_p * (in_size * hid_p + hid_p * out_size)
    bytes_accessed = (
        x_in.size * x_in.dtype.itemsize
        + params["w1"].size * 2 + params["w2"].size * 2
        + params["b1"].size * 4 + params["b2"].size * 4
        + B_p * out_size * jnp.dtype(out_dtype).itemsize)

    kernel = functools.partial(_mlp_kernel, n_sub=n_sub, sub_b=sub_b)

    out_full = pl.pallas_call(
        kernel,
        out_shape=jax.ShapeDtypeStruct((B_p, out_size), out_dtype),
        grid_spec=pltpu.PrefetchScalarGridSpec(
            num_scalar_prefetch=0,
            grid=grid,
            in_specs=[
                # PReLU alpha: single scalar in SMEM.
                pl.BlockSpec(memory_space=pltpu.MemorySpace.SMEM),
                # Activations: tiled over batch; resident across the hidden axis
                # (block index does not change with j -> fetched once per i).
                pl.BlockSpec((tile_b, in_size), lambda i, j: (i, 0)),
                # First-layer weight/bias: tiled over the hidden (reduction) axis.
                pl.BlockSpec((in_size, tile_h), lambda i, j: (0, j)),
                pl.BlockSpec((1, tile_h), lambda i, j: (0, j)),
                # Second-layer weight: tiled over hidden; bias is tiny & constant.
                pl.BlockSpec((tile_h, out_size), lambda i, j: (j, 0)),
                pl.BlockSpec((1, out_size), lambda i, j: (0, 0)),
            ],
            out_specs=pl.BlockSpec((tile_b, out_size), lambda i, j: (i, 0)),
            scratch_shapes=[pltpu.VMEM((tile_b, out_size), jnp.float32)],
        ),
        compiler_params=pltpu.CompilerParams(
            # Batch axis shards across TCs (v7x); hidden axis is a reduction.
            dimension_semantics=("parallel", "arbitrary"),
            vmem_limit_bytes=_vmem_limit_bytes(),
        ),
        cost_estimate=pl.CostEstimate(flops=int(flops), transcendentals=0,
                                      bytes_accessed=int(bytes_accessed)),
    )(params["alpha"], x_in, params["w1"], params["b1"], params["w2"],
      params["b2"])

    return out_full if B_p == B else out_full[:B]


def init_mlp_params(key, in_size, out_size, hidden_size):
    """Deterministic init mirroring nn.Linear (uniform +/- 1/sqrt(fan_in)) and
    nn.PReLU (alpha = 0.25). Weights stored pre-transposed."""
    k1, k2, k3, k4 = jax.random.split(key, 4)
    bound1 = 1.0 / jnp.sqrt(in_size)
    bound2 = 1.0 / jnp.sqrt(hidden_size)
    w1 = jax.random.uniform(k1, (in_size, hidden_size), jnp.float32, -bound1, bound1)
    b1 = jax.random.uniform(k2, (hidden_size,), jnp.float32, -bound1, bound1)
    w2 = jax.random.uniform(k3, (hidden_size, out_size), jnp.float32, -bound2, bound2)
    b2 = jax.random.uniform(k4, (out_size,), jnp.float32, -bound2, bound2)
    alpha = jnp.float32(0.25)
    return w1, b1, w2, b2, alpha


def mlp_reference_f32(x, w1, b1, w2, b2, alpha):
    h = x @ w1 + b1
    h = jnp.where(h > 0, h, alpha * h)
    return h @ w2 + b2


def mlp_reference_bf16(x, w1, b1, w2, b2, alpha):
    """Reference matching the kernel's numerics (bf16 matmul, f32 accumulate)."""
    # TODO(synk): if strict f32 parity with PyTorch is required, add an f32
    # (or bf16x3) matmul path instead of the bf16 MXU path.
    h = jnp.dot(x.astype(jnp.bfloat16), w1.astype(jnp.bfloat16),
                preferred_element_type=jnp.float32) + b1
    h = jnp.where(h > 0, h, alpha * h)
    return jnp.dot(h.astype(jnp.bfloat16), w2.astype(jnp.bfloat16),
                   preferred_element_type=jnp.float32) + b2


if __name__ == "__main__":
    key = jax.random.PRNGKey(0)

    def run_case(kx, kp, batch, in_size, hidden, out_size):
        x = jax.random.normal(kx, (batch, in_size), jnp.float32)
        w1, b1, w2, b2, alpha = init_mlp_params(kp, in_size, out_size, hidden)
        params = prepare_mlp_params(w1, b1, w2, b2, alpha)
        out = jax.block_until_ready(mlp_forward(x, params))
        assert out.shape == (batch, out_size)
        ref_bf16 = mlp_reference_bf16(x, w1, b1, w2, b2, alpha)
        assert jnp.allclose(out, ref_bf16, atol=2e-3, rtol=2e-3)
        ref_f32 = mlp_reference_f32(x, w1, b1, w2, b2, alpha)
        assert jnp.allclose(out, ref_f32, atol=5e-2, rtol=5e-2)

    k1, k2, k3, k4 = jax.random.split(key, 4)
    # Small case: 2 batch tiles x 1 hidden tile, in-kernel sub-chunking.
    run_case(k1, k2, batch=256, in_size=32, hidden=64, out_size=16)
    # Case exercising the hidden-reduction (accumulator) grid axis (2 chunks).
    run_case(k3, k4, batch=160, in_size=48, hidden=640, out_size=80)

    print("KERNEL_OK")
</pallas_src>

<mosaic_0001>
module attributes {stable_mosaic.version = 11 : i64} {
  func.func @_mlp_kernel(%arg0: i32, %arg1: i32, %arg2: memref<1xf32, #tpu.memory_space<smem>>, %arg3: memref<128x32xf32, #tpu.memory_space<vmem>>, %arg4: memref<32x128xbf16, #tpu.memory_space<vmem>>, %arg5: memref<1x128xf32, #tpu.memory_space<vmem>>, %arg6: memref<128x16xbf16, #tpu.memory_space<vmem>>, %arg7: memref<1x16xf32, #tpu.memory_space<vmem>>, %arg8: memref<128x16xf32, #tpu.memory_space<vmem>>, %arg9: memref<128x16xf32, #tpu.memory_space<vmem>>) attributes {dimension_semantics = [#tpu.dimension_semantics<parallel>, #tpu.dimension_semantics<arbitrary>], iteration_bounds = array<i64: 2, 1>, scalar_prefetch = 0 : i64, scratch_operands = 1 : i64, tpu.core_type = #tpu.core_type<tc>, window_params = [{transform_indices = @transform_0, window_bounds = array<i64: 1>}, {transform_indices = @transform_1, window_bounds = array<i64: 128, 32>}, {transform_indices = @transform_2, window_bounds = array<i64: 32, 128>}, {transform_indices = @transform_3, window_bounds = array<i64: 1, 128>}, {transform_indices = @transform_4, window_bounds = array<i64: 128, 16>}, {pipeline_mode = #tpu.pipeline_mode<synchronous>, transform_indices = @transform_5, window_bounds = array<i64: 1, 16>}, {transform_indices = @transform_6, window_bounds = array<i64: 128, 16>}]} {
    %c0_i32 = arith.constant 0 : i32
    %0 = arith.cmpi eq, %arg1, %c0_i32 : i32
    %1 = arith.extui %0 : i1 to i32
    %c0_i32_0 = arith.constant 0 : i32
    %2 = arith.cmpi ne, %1, %c0_i32_0 : i32
    scf.if %2 {
      %cst_22 = arith.constant 0.000000e+00 : f32
      %50 = vector.broadcast %cst_22 : f32 to vector<128x16xf32>
      %c0_23 = arith.constant 0 : index
      %c0_24 = arith.constant 0 : index
      %51 = vector.load %arg9[%c0_23, %c0_24] : memref<128x16xf32, #tpu.memory_space<vmem>>, vector<128x16xf32>
      tpu.vector_store %arg9[%c0_23, %c0_24], %50 {strides = array<i32>} : memref<128x16xf32, #tpu.memory_space<vmem>>, vector<128x16xf32>,
    } else {
    }
    %c0 = arith.constant 0 : index
    %3 = memref.load %arg2[%c0] : memref<1xf32, #tpu.memory_space<smem>>
    %c0_1 = arith.constant 0 : index
    %c0_2 = arith.constant 0 : index
    %4 = vector.load %arg4[%c0_1, %c0_2] : memref<32x128xbf16, #tpu.memory_space<vmem>>, vector<32x128xbf16>
    %c0_3 = arith.constant 0 : index
    %c0_4 = arith.constant 0 : index
    %5 = vector.load %arg5[%c0_3, %c0_4] : memref<1x128xf32, #tpu.memory_space<vmem>>, vector<1x128xf32>
    %c0_5 = arith.constant 0 : index
    %c0_6 = arith.constant 0 : index
    %6 = vector.load %arg6[%c0_5, %c0_6] : memref<128x16xbf16, #tpu.memory_space<vmem>>, vector<128x16xbf16>
    %c0_i32_7 = arith.constant 0 : i32
    %c64_i32 = arith.constant 64 : i32
    %7 = arith.muli %c0_i32_7, %c64_i32 : i32
    %8 = tpu.assume_multiple %7, 64 : i32
    %9 = arith.index_cast %8 : i32 to index
    %c0_8 = arith.constant 0 : index
    %10 = vector.load %arg3[%9, %c0_8] : memref<128x32xf32, #tpu.memory_space<vmem>>, vector<64x32xf32>
    %11 = arith.truncf %10 : vector<64x32xf32> to vector<64x32xbf16>
    %cst = arith.constant dense<0.000000e+00> : vector<64x128xf32>
    %12 = tpu.matmul %11, %4, %cst {dimension_numbers = #tpu.dot_dimension_numbers<[1], [0], [0], [1], [0, 0, 1, 1], [], []>} : vector<64x32xbf16>, vector<32x128xbf16>, vector<64x128xf32> -> vector<64x128xf32>
    %13 = vector.broadcast %5 : vector<1x128xf32> to vector<64x128xf32>
    %14 = arith.addf %12, %13 : vector<64x128xf32>
    %cst_9 = arith.constant 0.000000e+00 : f32
    %15 = vector.broadcast %cst_9 : f32 to vector<64x128xf32>
    %16 = arith.cmpf ogt, %14, %15 : vector<64x128xf32>
    %17 = vector.broadcast %3 : f32 to vector<64x128xf32>
    %18 = arith.mulf %17, %14 : vector<64x128xf32>
    %19 = arith.select %16, %14, %18 : vector<64x128xi1>, vector<64x128xf32>
    %20 = arith.index_cast %8 : i32 to index
    %c0_10 = arith.constant 0 : index
    %21 = vector.load %arg9[%20, %c0_10] : memref<128x16xf32, #tpu.memory_space<vmem>>, vector<64x16xf32>
    %22 = arith.truncf %19 : vector<64x128xf32> to vector<64x128xbf16>
    %cst_11 = arith.constant dense<0.000000e+00> : vector<64x16xf32>
    %23 = tpu.matmul %22, %6, %cst_11 {dimension_numbers = #tpu.dot_dimension_numbers<[1], [0], [0], [1], [0, 0, 1, 1], [], []>} : vector<64x128xbf16>, vector<128x16xbf16>, vector<64x16xf32> -> vector<64x16xf32>
    %24 = arith.addf %21, %23 : vector<64x16xf32>
    %25 = arith.index_cast %8 : i32 to index
    %c0_12 = arith.constant 0 : index
    %26 = vector.load %arg9[%25, %c0_12] : memref<128x16xf32, #tpu.memory_space<vmem>>, vector<64x16xf32>
    tpu.vector_store %arg9[%25, %c0_12], %24 {strides = array<i32>} : memref<128x16xf32, #tpu.memory_space<vmem>>, vector<64x16xf32>,
    %c1_i32 = arith.constant 1 : i32
    %c64_i32_13 = arith.constant 64 : i32
    %27 = arith.muli %c1_i32, %c64_i32_13 : i32
    %28 = tpu.assume_multiple %27, 64 : i32
    %29 = arith.index_cast %28 : i32 to index
    %c0_14 = arith.constant 0 : index
    %30 = vector.load %arg3[%29, %c0_14] : memref<128x32xf32, #tpu.memory_space<vmem>>, vector<64x32xf32>
    %31 = arith.truncf %30 : vector<64x32xf32> to vector<64x32xbf16>
    %cst_15 = arith.constant dense<0.000000e+00> : vector<64x128xf32>
    %32 = tpu.matmul %31, %4, %cst_15 {dimension_numbers = #tpu.dot_dimension_numbers<[1], [0], [0], [1], [0, 0, 1, 1], [], []>} : vector<64x32xbf16>, vector<32x128xbf16>, vector<64x128xf32> -> vector<64x128xf32>
    %33 = vector.broadcast %5 : vector<1x128xf32> to vector<64x128xf32>
    %34 = arith.addf %32, %33 : vector<64x128xf32>
    %cst_16 = arith.constant 0.000000e+00 : f32
    %35 = vector.broadcast %cst_16 : f32 to vector<64x128xf32>
    %36 = arith.cmpf ogt, %34, %35 : vector<64x128xf32>
    %37 = vector.broadcast %3 : f32 to vector<64x128xf32>
    %38 = arith.mulf %37, %34 : vector<64x128xf32>
    %39 = arith.select %36, %34, %38 : vector<64x128xi1>, vector<64x128xf32>
    %40 = arith.index_cast %28 : i32 to index
    %c0_17 = arith.constant 0 : index
    %41 = vector.load %arg9[%40, %c0_17] : memref<128x16xf32, #tpu.memory_space<vmem>>, vector<64x16xf32>
    %42 = arith.truncf %39 : vector<64x128xf32> to vector<64x128xbf16>
    %cst_18 = arith.constant dense<0.000000e+00> : vector<64x16xf32>
    %43 = tpu.matmul %42, %6, %cst_18 {dimension_numbers = #tpu.dot_dimension_numbers<[1], [0], [0], [1], [0, 0, 1, 1], [], []>} : vector<64x128xbf16>, vector<128x16xbf16>, vector<64x16xf32> -> vector<64x16xf32>
    %44 = arith.addf %41, %43 : vector<64x16xf32>
    %45 = arith.index_cast %28 : i32 to index
    %c0_19 = arith.constant 0 : index
    %46 = vector.load %arg9[%45, %c0_19] : memref<128x16xf32, #tpu.memory_space<vmem>>, vector<64x16xf32>
    tpu.vector_store %arg9[%45, %c0_19], %44 {strides = array<i32>} : memref<128x16xf32, #tpu.memory_space<vmem>>, vector<64x16xf32>,
    %c2_i32 = arith.constant 2 : i32
    %c0_i32_20 = arith.constant 0 : i32
    %47 = arith.cmpi eq, %arg1, %c0_i32_20 : i32
    %48 = arith.extui %47 : i1 to i32
    %c0_i32_21 = arith.constant 0 : i32
    %49 = arith.cmpi ne, %48, %c0_i32_21 : i32
    scf.if %49 {
      %c0_22 = arith.constant 0 : index
      %c0_23 = arith.constant 0 : index
      %50 = vector.load %arg9[%c0_22, %c0_23] : memref<128x16xf32, #tpu.memory_space<vmem>>, vector<128x16xf32>
      %c0_24 = arith.constant 0 : index
      %c0_25 = arith.constant 0 : index
      %51 = vector.load %arg7[%c0_24, %c0_25] : memref<1x16xf32, #tpu.memory_space<vmem>>, vector<1x16xf32>
      %52 = vector.broadcast %51 : vector<1x16xf32> to vector<128x16xf32>
      %53 = arith.addf %50, %52 : vector<128x16xf32>
      %c0_26 = arith.constant 0 : index
      %c0_27 = arith.constant 0 : index
      %54 = vector.load %arg8[%c0_26, %c0_27] : memref<128x16xf32, #tpu.memory_space<vmem>>, vector<128x16xf32>
      tpu.vector_store %arg8[%c0_26, %c0_27], %53 {strides = array<i32>} : memref<128x16xf32, #tpu.memory_space<vmem>>, vector<128x16xf32>,
    } else {
    }
    return
  }
  func.func @transform_0(%arg0: i32, %arg1: i32) -> i32 {
    %c0_i32 = arith.constant 0 : i32
    %c0_i32_0 = arith.constant 0 : i32
    return %c0_i32 : i32
  }
  func.func @transform_1(%arg0: i32, %arg1: i32) -> (i32, i32) {
    %c0_i32 = arith.constant 0 : i32
    %c0_i32_0 = arith.constant 0 : i32
    return %arg0, %c0_i32 : i32, i32
  }
  func.func @transform_2(%arg0: i32, %arg1: i32) -> (i32, i32) {
    %c0_i32 = arith.constant 0 : i32
    %c0_i32_0 = arith.constant 0 : i32
    return %c0_i32, %arg1 : i32, i32
  }
  func.func @transform_3(%arg0: i32, %arg1: i32) -> (i32, i32) {
    %c0_i32 = arith.constant 0 : i32
    %c0_i32_0 = arith.constant 0 : i32
    return %c0_i32, %arg1 : i32, i32
  }
  func.func @transform_4(%arg0: i32, %arg1: i32) -> (i32, i32) {
    %c0_i32 = arith.constant 0 : i32
    %c0_i32_0 = arith.constant 0 : i32
    return %arg1, %c0_i32 : i32, i32
  }
  func.func @transform_5(%arg0: i32, %arg1: i32) -> (i32, i32) {
    %c0_i32 = arith.constant 0 : i32
    %c0_i32_0 = arith.constant 0 : i32
    %c0_i32_1 = arith.constant 0 : i32
    return %c0_i32, %c0_i32_0 : i32, i32
  }
  func.func @transform_6(%arg0: i32, %arg1: i32) -> (i32, i32) {
    %c0_i32 = arith.constant 0 : i32
    %c0_i32_0 = arith.constant 0 : i32
    return %arg0, %c0_i32 : i32, i32
  }
}

</mosaic_0001>

<llo_original>
// kernel: tpu_custom_call.1
$region0: #{tpu_custom_call.1}
  #allocation0 [shape = 'u32[]', space=smem, size = 0x4, offset = 0x4, fixed_abs, tag = 'smem constant byte address 0x4 - core index']
  #allocation1 [shape = 'u32[144,128]{1,0:T(1,128)}', space=vmem, size = 0x12000, scoped, tag = 'internal scratch']
  #allocation2 [shape = 'f32[128,16]{1,0:T(8,128)}', space=vmem, size = 0x10000, scoped, tag = 'scratch operand']
  #allocation3 [shape = 'f32[1]{0:T(128)S(6)}', space=smem, size = 0x200, scoped, tag = 'scoped memory for tpu_custom_call.1']
  %s0 = inlined_call_operand.<no memory space> [shape: f32[1], index: 0, kind: input, shape index: {}]
  %s1 = inlined_call_operand.hbm [shape: f32[256,32], index: 1, kind: input, shape index: {}]
  %s2 = inlined_call_operand.hbm [shape: bf16[32,128], index: 2, kind: input, shape index: {}]
  %s3 = inlined_call_operand.hbm [shape: f32[1,128], index: 3, kind: input, shape index: {}]
  %s4 = inlined_call_operand.hbm [shape: bf16[128,16], index: 4, kind: input, shape index: {}]
  %s5 = inlined_call_operand.hbm [shape: f32[1,16], index: 5, kind: input, shape index: {}]
  %s6 = inlined_call_operand.hbm [shape: f32[256,16], index: 6, kind: output, shape index: {}]
  %s7 = sld [smem:[#allocation0]]
  $region85: #{tpu_custom_call.1} parent=0
    _
  %s9 = ssub.s32 1, %s7
  %s10 = scalar_select 0, %s9, %s7
  %11 = sst [smem:[#allocation3]] %s0
  $region1: #{tpu_custom_call.1} parent=0
    #allocation4 [shape = 'u8[131072]{0}', space=vmem, size = 0x20000, scoped, tag = 'input window, operand 1']
    #allocation5 [shape = 's32[2]{0}', space=sflag, size = 0x8, scoped, tag = 'scoped memory for tpu_custom_call.1']
    #allocation6 [shape = 's32[2]{0}', space=sflag, size = 0x8, scoped, tag = 'scoped memory for tpu_custom_call.1']
    #allocation7 [shape = 'u8[8192]{0}', space=vmem, size = 0x2000, scoped, tag = 'input window, operand 2, single buffered']
    #allocation8 [shape = 's32[1]{0}', space=sflag, size = 0x4, scoped, tag = 'scoped memory for tpu_custom_call.1']
    #allocation9 [shape = 'u8[512]{0}', space=vmem, size = 0x400, scoped, tag = 'input window, operand 3, single buffered']
    #allocation10 [shape = 'u8[32768]{0}', space=vmem, size = 0x8000, scoped, tag = 'input window, operand 4, single buffered']
    #allocation11 [shape = 's32[1]{0}', space=sflag, size = 0x4, scoped, tag = 'scoped memory for tpu_custom_call.1']
    #allocation12 [shape = 'u8[512]{0}', space=vmem, size = 0x400, scoped, tag = 'input window, operand 5, single buffered']
    #allocation13 [shape = 'u8[131072]{0}', space=vmem, size = 0x20000, scoped, tag = 'output window, operand 0']
    %12 = vsyncpa [#allocation5], 0
    %s13 = scalar_lea.sflag [#allocation5], 1
    %14 = vsyncpa %s13, 0
    %15 = vsyncpa [#allocation8], 0
    %16 = vsyncpa [#allocation11], 0
    %17 = vsyncpa [#allocation6], 0
    %s18 = scalar_lea.sflag [#allocation6], 1
    %19 = vsyncpa %s18, 0
    loop: start=0, step=1, limit=4
    $region2: #{tpu_custom_call.1} parent=1 // loop_pre_header
      _
    $region3: #{tpu_custom_call.1} parent=1 // loop_header
      %s21 = sphi 0, %s25
      %p22 = scmp.ge.s32.totalorder %s21, 4
      %s28 = sphi 0, %s40
      %s29 = sphi 0, %s36
      %s30 = sphi 0, %s28
      %s31 = sphi 0, %s29
      %s32 = sphi 0, %s30
      %s33 = sphi 0, %s31
      %s41 = sphi 0, %s41
      %s43 = sphi 0, %s41
      %s44 = sphi 0, %s43
      %s58 = sphi 0, %s44
      %s64 = sphi 0, %s66
      %s67 = sphi 0, %s64
      %s68 = sphi 0, %s67
      %s84 = sphi 0, %s68
      %s90 = sphi 0, %s92
      %s93 = sphi 0, %s90
      %s94 = sphi 0, %s93
      %s110 = sphi 0, %s94
      %s116 = sphi 0, %s118
      %s119 = sphi 0, %s116
      %s120 = sphi 0, %s119
      %s136 = sphi 0, %s120
      %s142 = sphi 0, %s144
      %s145 = sphi 0, %s142
      %s146 = sphi 0, %s145
      %s162 = sphi 0, %s146
      %s166 = sphi 0, %s166
      %s168 = sphi 0, %s166
      %s169 = sphi 0, %s168
      %s183 = sphi 0, %s169
      %s189 = sphi 0, %s191
      %s192 = sphi 0, %s189
      %s193 = sphi 0, %s192
      %s209 = sphi 0, %s193
    $region4: #{tpu_custom_call.1} parent=1 // loop_header_branch
      %24 = sbr.rel (%p22) target = $region8
    $region5: #{tpu_custom_call.1} parent=1 // loop_body
      %s26 = ssub.s32 %s21, 1
      %s27 = ssub.s32 %s21, 2
      %s34 = sadd.s32 1, %s29
      %p35 = scmp.ge.s32.totalorder %s34, 1
      %s36 = scalar_select %p35, 0, %s34
      %s37 = sadd.s32 1, %s28
      %s38 = scalar_select %p35, %s37, %s28
      %p39 = scmp.ge.s32.totalorder %s38, 2
      %s40 = scalar_select %p39, 0, %s38
      %s42 = sadd.s32 %s41, 1
      %p45 = scmp.eq.s32.totalorder %s21, 1
      %p46 = scmp.ne.s32.totalorder %s41, %s43
      %p47 = scmp.eq.s32.totalorder %s21, 0
      %p48 = por %p46, %p47
      %p49 = scmp.ne.s32.totalorder %s41, %s43
      %p50 = scmp.eq.s32.totalorder %s26, 1
      %p51 = por %p49, %p50
      %p52 = scmp.ne.s32.totalorder %s43, %s44
      %p53 = scmp.eq.s32.totalorder %s26, 0
      %p54 = por %p52, %p53
      %p55 = scmp.ne.s32.totalorder %s43, %s44
      %p56 = scmp.eq.s32.totalorder %s27, 1
      %p57 = por %p55, %p56
      %p59 = scmp.ne.s32.totalorder %s44, %s58
      %p60 = scmp.eq.s32.totalorder %s27, 0
      %p61 = por %p59, %p60
      %s62 = ssub.s32 %s28, %s40
      %p63 = scmp.eq.s32.totalorder %s62, 0
      %s65 = sadd.s32 %s64, 1
      %s66 = scalar_select %p63, %s64, %s65
      %p69 = pneg %p63
      %p70 = scmp.eq.s32.totalorder %s21, 1
      %p71 = por %p69, %p70
      %p72 = scmp.ne.s32.totalorder %s64, %s67
      %p73 = scmp.eq.s32.totalorder %s21, 0
      %p74 = por %p72, %p73
      %p75 = scmp.ne.s32.totalorder %s64, %s67
      %p76 = scmp.eq.s32.totalorder %s26, 1
      %p77 = por %p75, %p76
      %p78 = scmp.ne.s32.totalorder %s67, %s68
      %p79 = scmp.eq.s32.totalorder %s26, 0
      %p80 = por %p78, %p79
      %p81 = scmp.ne.s32.totalorder %s67, %s68
      %p82 = scmp.eq.s32.totalorder %s27, 1
      %p83 = por %p81, %p82
      %p85 = scmp.ne.s32.totalorder %s68, %s84
      %p86 = scmp.eq.s32.totalorder %s27, 0
      %p87 = por %p85, %p86
      %s88 = ssub.s32 %s29, %s36
      %p89 = scmp.eq.s32.totalorder %s88, 0
      %s91 = sadd.s32 %s90, 1
      %s92 = scalar_select %p89, %s90, %s91
      %p95 = pneg %p89
      %p96 = scmp.eq.s32.totalorder %s21, 1
      %p97 = por %p95, %p96
      %p98 = scmp.ne.s32.totalorder %s90, %s93
      %p99 = scmp.eq.s32.totalorder %s21, 0
      %p100 = por %p98, %p99
      %p101 = scmp.ne.s32.totalorder %s90, %s93
      %p102 = scmp.eq.s32.totalorder %s26, 1
      %p103 = por %p101, %p102
      %p104 = scmp.ne.s32.totalorder %s93, %s94
      %p105 = scmp.eq.s32.totalorder %s26, 0
      %p106 = por %p104, %p105
      %p107 = scmp.ne.s32.totalorder %s93, %s94
      %p108 = scmp.eq.s32.totalorder %s27, 1
      %p109 = por %p107, %p108
      %p111 = scmp.ne.s32.totalorder %s94, %s110
      %p112 = scmp.eq.s32.totalorder %s27, 0
      %p113 = por %p111, %p112
      %s114 = ssub.s32 %s29, %s36
      %p115 = scmp.eq.s32.totalorder %s114, 0
      %s117 = sadd.s32 %s116, 1
      %s118 = scalar_select %p115, %s116, %s117
      %p121 = pneg %p115
      %p122 = scmp.eq.s32.totalorder %s21, 1
      %p123 = por %p121, %p122
      %p124 = scmp.ne.s32.totalorder %s116, %s119
      %p125 = scmp.eq.s32.totalorder %s21, 0
      %p126 = por %p124, %p125
      %p127 = scmp.ne.s32.totalorder %s116, %s119
      %p128 = scmp.eq.s32.totalorder %s26, 1
      %p129 = por %p127, %p128
      %p130 = scmp.ne.s32.totalorder %s119, %s120
      %p131 = scmp.eq.s32.totalorder %s26, 0
      %p132 = por %p130, %p131
      %p133 = scmp.ne.s32.totalorder %s119, %s120
      %p134 = scmp.eq.s32.totalorder %s27, 1
      %p135 = por %p133, %p134
      %p137 = scmp.ne.s32.totalorder %s120, %s136
      %p138 = scmp.eq.s32.totalorder %s27, 0
      %p139 = por %p137, %p138
      %s140 = ssub.s32 %s29, %s36
      %p141 = scmp.eq.s32.totalorder %s140, 0
      %s143 = sadd.s32 %s142, 1
      %s144 = scalar_select %p141, %s142, %s143
      %p147 = pneg %p141
      %p148 = scmp.eq.s32.totalorder %s21, 1
      %p149 = por %p147, %p148
      %p150 = scmp.ne.s32.totalorder %s142, %s145
      %p151 = scmp.eq.s32.totalorder %s21, 0
      %p152 = por %p150, %p151
      %p153 = scmp.ne.s32.totalorder %s142, %s145
      %p154 = scmp.eq.s32.totalorder %s26, 1
      %p155 = por %p153, %p154
      %p156 = scmp.ne.s32.totalorder %s145, %s146
      %p157 = scmp.eq.s32.totalorder %s26, 0
      %p158 = por %p156, %p157
      %p159 = scmp.ne.s32.totalorder %s145, %s146
      %p160 = scmp.eq.s32.totalorder %s27, 1
      %p161 = por %p159, %p160
      %p163 = scmp.ne.s32.totalorder %s146, %s162
      %p164 = scmp.eq.s32.totalorder %s27, 0
      %p165 = por %p163, %p164
      %s167 = sadd.s32 %s166, 1
      %p170 = scmp.eq.s32.totalorder %s21, 1
      %p171 = scmp.ne.s32.totalorder %s166, %s168
      %p172 = scmp.eq.s32.totalorder %s21, 0
      %p173 = por %p171, %p172
      %p174 = scmp.ne.s32.totalorder %s166, %s168
      %p175 = scmp.eq.s32.totalorder %s26, 1
      %p176 = por %p174, %p175
      %p177 = scmp.ne.s32.totalorder %s168, %s169
      %p178 = scmp.eq.s32.totalorder %s26, 0
      %p179 = por %p177, %p178
      %p180 = scmp.ne.s32.totalorder %s168, %s169
      %p181 = scmp.eq.s32.totalorder %s27, 1
      %p182 = por %p180, %p181
      %p184 = scmp.ne.s32.totalorder %s169, %s183
      %p185 = scmp.eq.s32.totalorder %s27, 0
      %p186 = por %p184, %p185
      %s187 = ssub.s32 %s28, %s40
      %p188 = scmp.eq.s32.totalorder %s187, 0
      %s190 = sadd.s32 %s189, 1
      %s191 = scalar_select %p188, %s189, %s190
      %p194 = pneg %p188
      %p195 = scmp.eq.s32.totalorder %s21, 1
      %p196 = por %p194, %p195
      %p197 = scmp.ne.s32.totalorder %s189, %s192
      %p198 = scmp.eq.s32.totalorder %s21, 0
      %p199 = por %p197, %p198
      %p200 = scmp.ne.s32.totalorder %s189, %s192
      %p201 = scmp.eq.s32.totalorder %s26, 1
      %p202 = por %p200, %p201
      %p203 = scmp.ne.s32.totalorder %s192, %s193
      %p204 = scmp.eq.s32.totalorder %s26, 0
      %p205 = por %p203, %p204
      %p206 = scmp.ne.s32.totalorder %s192, %s193
      %p207 = scmp.eq.s32.totalorder %s27, 1
      %p208 = por %p206, %p207
      %p210 = scmp.ne.s32.totalorder %s193, %s209
      %p211 = scmp.eq.s32.totalorder %s27, 0
      %p212 = por %p210, %p211
      %p213 = scmp.le.s32.totalorder 1, %s21
      %p214 = scmp.lt.s32.totalorder %s21, 3
      %p215 = pnand %p213, %p214
      %p216 = pneg %p215
      // Predicated region
      $region9: #{tpu_custom_call.1} parent=5 // pred_check
        _
      $region10: #{tpu_custom_call.1} parent=5 // pred_check_branch
        %218 = sbr.rel (%p215) target = $region12
      $region11: #{tpu_custom_call.1} parent=5 // pred_region
        %s219 = ssub.s32 %s21, 1
        // Predicated region
        $region13: #{tpu_custom_call.1} parent=11 // pred_check
          %p220 = pneg %p54
        $region14: #{tpu_custom_call.1} parent=11 // pred_check_branch
          %222 = sbr.rel (%p220) target = $region16
        $region15: #{tpu_custom_call.1} parent=11 // pred_region
          _
        $region16: #{tpu_custom_call.1} parent=11 // pred_fallthru
          _
        // Predicated region
        $region17: #{tpu_custom_call.1} parent=11 // pred_check
          %p223 = pneg %p106
        $region18: #{tpu_custom_call.1} parent=11 // pred_check_branch
          %225 = sbr.rel (%p223) target = $region20
        $region19: #{tpu_custom_call.1} parent=11 // pred_region
          %s227 = ssub.s32 256, 256
          %228 = vsyncadd [#allocation8], %s227
          %s229 = smul.addr %s31, 64
          %s230 = scalar_lea.hbm %s2, %s229
          %s231 = sshll.u32 [#allocation7], 4
          %s232 = int_to_ptr.vmem [resolvable:$true] %s231
          %237 = dma.hbm_to_vmem [thread:$0]  %s230, 256, %s232, [#allocation8], 64, 64, 4
        $region20: #{tpu_custom_call.1} parent=11 // pred_fallthru
          _
        // Predicated region
        $region21: #{tpu_custom_call.1} parent=11 // pred_check
          %p238 = pneg %p132
        $region22: #{tpu_custom_call.1} parent=11 // pred_check_branch
          %240 = sbr.rel (%p238) target = $region24
        $region23: #{tpu_custom_call.1} parent=11 // pred_region
          %s242 = ssub.s32 16, 16
          %243 = vsyncadd [#allocation8], %s242
          %s244 = smul.addr %s31, 16
          %s245 = scalar_lea.hbm %s3, %s244
          %s247 = sshll.u32 [#allocation9], 4
          %s248 = int_to_ptr.vmem [resolvable:$true] %s247
          %250 = dma.hbm_to_vmem [thread:$0]  %s245, 16, %s248, [#allocation8]
        $region24: #{tpu_custom_call.1} parent=11 // pred_fallthru
          _
        // Predicated region
        $region25: #{tpu_custom_call.1} parent=11 // pred_check
          %p251 = pneg %p158
        $region26: #{tpu_custom_call.1} parent=11 // pred_check_branch
          %253 = sbr.rel (%p251) target = $region28
        $region27: #{tpu_custom_call.1} parent=11 // pred_region
          %s254 = smul.u32 16, %s31
          %s256 = ssub.s32 1024, 1024
          %257 = vsyncadd [#allocation11], %s256
          %s258 = smul.addr %s254, 64
          %s259 = scalar_lea.hbm %s4, %s258
          %s260 = sshll.u32 [#allocation10], 4
          %s261 = int_to_ptr.vmem [resolvable:$true] %s260
          %266 = dma.hbm_to_vmem [thread:$0]  %s259, 1024, %s261, [#allocation11], 64, 64, 4
        $region28: #{tpu_custom_call.1} parent=11 // pred_fallthru
          _
        // Predicated region
        $region29: #{tpu_custom_call.1} parent=11 // pred_check
          %p267 = pneg %p179
        $region30: #{tpu_custom_call.1} parent=11 // pred_check_branch
          %269 = sbr.rel (%p267) target = $region32
        $region31: #{tpu_custom_call.1} parent=11 // pred_region
          %s271 = ssub.s32 16, 16
          %272 = vsyncadd [#allocation11], %s271
          %s274 = sshll.u32 [#allocation12], 4
          %s275 = int_to_ptr.vmem [resolvable:$true] %s274
          %277 = dma.hbm_to_vmem [thread:$0]  %s5, 16, %s275, [#allocation11]
        $region32: #{tpu_custom_call.1} parent=11 // pred_fallthru
          _
      $region12: #{tpu_custom_call.1} parent=5 // pred_fallthru
        _
      %p278 = scmp.lt.s32.totalorder %s21, 2
      // Predicated region
      $region33: #{tpu_custom_call.1} parent=5 // pred_check
        %p279 = pneg %p278
      $region34: #{tpu_custom_call.1} parent=5 // pred_check_branch
        %281 = sbr.rel (%p279) target = $region36
      $region35: #{tpu_custom_call.1} parent=5 // pred_region
        // Predicated region
        $region37: #{tpu_custom_call.1} parent=35 // pred_check
          %p282 = pneg %p74
        $region38: #{tpu_custom_call.1} parent=35 // pred_check_branch
          %284 = sbr.rel (%p282) target = $region40
        $region39: #{tpu_custom_call.1} parent=35 // pred_region
          %s285 = sand.u32 %s64, 1
          %s286 = scalar_lea.sflag [#allocation5], %s285
          %s287 = sand.u32 %s64, 1
          %s288 = smul.addr %s287, 128
          %s289 = scalar_lea.vmem [#allocation4], %s288
          %s290 = smul.u32 16, %s28
          %s292 = ssub.s32 2048, 2048
          %293 = vsyncadd %s286, %s292
          %s294 = smul.addr %s290, 128
          %s295 = scalar_lea.hbm %s1, %s294
          %s296 = sshll.u32 %s289, 4
          %s297 = int_to_ptr.vmem [resolvable:$true] %s296
          %302 = dma.hbm_to_vmem [thread:$0]  %s295, 2048, %s297, %s286, 128, 128, 8
        $region40: #{tpu_custom_call.1} parent=35 // pred_fallthru
          _
      $region36: #{tpu_custom_call.1} parent=5 // pred_fallthru
        _
      %p303 = scmp.le.s32.totalorder 1, %s21
      %p304 = scmp.lt.s32.totalorder %s21, 3
      %p305 = pnand %p303, %p304
      %p306 = pneg %p305
      // Predicated region
      $region41: #{tpu_custom_call.1} parent=5 // pred_check
        _
      $region42: #{tpu_custom_call.1} parent=5 // pred_check_branch
        %308 = sbr.rel (%p305) target = $region44
      $region43: #{tpu_custom_call.1} parent=5 // pred_region
        %s309 = ssub.s32 %s21, 1
        %s310 = sand.u32 %s67, 1
        %s311 = scalar_lea.sflag [#allocation5], %s310
        %s312 = sand.u32 %s67, 1
        %s313 = smul.addr %s312, 128
        %s314 = scalar_lea.vmem [#allocation4], %s313
        // Predicated region
        $region45: #{tpu_custom_call.1} parent=43 // pred_check
          %p315 = pneg %p80
        $region46: #{tpu_custom_call.1} parent=43 // pred_check_branch
          %317 = sbr.rel (%p315) target = $region48
        $region47: #{tpu_custom_call.1} parent=43 // pred_region
          %318 = dma.done %s311, 2048
        $region48: #{tpu_custom_call.1} parent=43 // pred_fallthru
          _
        // Predicated region
        $region49: #{tpu_custom_call.1} parent=43 // pred_check
          %p319 = pneg %p106
        $region50: #{tpu_custom_call.1} parent=43 // pred_check_branch
          %321 = sbr.rel (%p319) target = $region52
        $region51: #{tpu_custom_call.1} parent=43 // pred_region
          %322 = dma.done [#allocation8], 256
        $region52: #{tpu_custom_call.1} parent=43 // pred_fallthru
          _
        // Predicated region
        $region53: #{tpu_custom_call.1} parent=43 // pred_check
          %p323 = pneg %p132
        $region54: #{tpu_custom_call.1} parent=43 // pred_check_branch
          %325 = sbr.rel (%p323) target = $region56
        $region55: #{tpu_custom_call.1} parent=43 // pred_region
          %326 = dma.done [#allocation8], 16
        $region56: #{tpu_custom_call.1} parent=43 // pred_fallthru
          _
        // Predicated region
        $region57: #{tpu_custom_call.1} parent=43 // pred_check
          %p327 = pneg %p158
        $region58: #{tpu_custom_call.1} parent=43 // pred_check_branch
          %329 = sbr.rel (%p327) target = $region60
        $region59: #{tpu_custom_call.1} parent=43 // pred_region
          %330 = dma.done [#allocation11], 1024
        $region60: #{tpu_custom_call.1} parent=43 // pred_fallthru
          _
        // Predicated region
        $region61: #{tpu_custom_call.1} parent=43 // pred_check
          %p331 = pneg %p179
        $region62: #{tpu_custom_call.1} parent=43 // pred_check_branch
          %333 = sbr.rel (%p331) target = $region64
        $region63: #{tpu_custom_call.1} parent=43 // pred_region
          %334 = dma.done [#allocation11], 16
        $region64: #{tpu_custom_call.1} parent=43 // pred_fallthru
          _
        %p335 = pneg %p54
        %p336 = pneg %p51
        %s337 = sand.u32 %s67, 1
        %s338 = scalar_lea.sflag [#allocation5], %s337
        %s339 = sand.u32 %s67, 1
        %s340 = smul.addr %s339, 128
        %s341 = scalar_lea.vmem [#allocation4], %s340
        %p342 = pneg %p80
        %p343 = pneg %p77
        %p344 = pneg %p106
        %p345 = pneg %p103
        %p346 = pneg %p132
        %p347 = pneg %p129
        %p348 = pneg %p158
        %p349 = pneg %p155
        %p350 = pneg %p179
        %p351 = pneg %p176
        %p352 = pneg %p205
        %p353 = pneg %p202
        %s354 = sand.u32 %s192, 1
        %s355 = scalar_lea.sflag [#allocation6], %s354
        %s356 = sand.u32 %s192, 1
        %s357 = smul.addr %s356, 128
        %s358 = scalar_lea.vmem [#allocation13], %s357
        %s359 = smul.u32 16, %s30
        %s360 = smul.u32 16, %s31
        %s361 = smul.u32 16, %s30
        %p363 = scmp.eq.s32.totalorder %s31, 0
        // Predicated region
        $region65: #{tpu_custom_call.1} parent=43 // pred_check
          %p364 = pneg %p363
        $region66: #{tpu_custom_call.1} parent=43 // pred_check_branch
          %366 = sbr.rel (%p364) target = $region68
        $region67: #{tpu_custom_call.1} parent=43 // pred_region
          %vm367 = vcmask 130048
          %368 = vst.msk [vmem:[#allocation2] sm:$0xff] %vm367, 0.0
          %369 = vst.msk [vmem:[#allocation2 + $0x8] sm:$0xff] %vm367, 0.0
          %370 = vst.msk [vmem:[#allocation2 + $0x10] sm:$0xff] %vm367, 0.0
          %371 = vst.msk [vmem:[#allocation2 + $0x18] sm:$0xff] %vm367, 0.0
          %372 = vst.msk [vmem:[#allocation2 + $0x20] sm:$0xff] %vm367, 0.0
          %373 = vst.msk [vmem:[#allocation2 + $0x28] sm:$0xff] %vm367, 0.0
          %374 = vst.msk [vmem:[#allocation2 + $0x30] sm:$0xff] %vm367, 0.0
          %375 = vst.msk [vmem:[#allocation2 + $0x38] sm:$0xff] %vm367, 0.0
          %376 = vst.msk [vmem:[#allocation2 + $0x40] sm:$0xff] %vm367, 0.0
          %377 = vst.msk [vmem:[#allocation2 + $0x48] sm:$0xff] %vm367, 0.0
          %378 = vst.msk [vmem:[#allocation2 + $0x50] sm:$0xff] %vm367, 0.0
          %379 = vst.msk [vmem:[#allocation2 + $0x58] sm:$0xff] %vm367, 0.0
          %380 = vst.msk [vmem:[#allocation2 + $0x60] sm:$0xff] %vm367, 0.0
          %381 = vst.msk [vmem:[#allocation2 + $0x68] sm:$0xff] %vm367, 0.0
          %382 = vst.msk [vmem:[#allocation2 + $0x70] sm:$0xff] %vm367, 0.0
          %383 = vst.msk [vmem:[#allocation2 + $0x78] sm:$0xff] %vm367, 0.0
        $region68: #{tpu_custom_call.1} parent=43 // pred_fallthru
          _
        %s384 = sld [smem:[#allocation3]]
        %v385 = vld [vmem:[#allocation7] sm:$0xf]
        %v386 = vld [vmem:[#allocation7 + $0x4] sm:$0xf]
        %v387 = vld [vmem:[#allocation7 + $0x8] sm:$0xf]
        %v388 = vld [vmem:[#allocation7 + $0xc] sm:$0xf]
        %v389 = vld [vmem:[#allocation9] sm:$0x1]
        %v390 = vld [vmem:[#allocation10] sm:$0xf]
        %v391 = vld [vmem:[#allocation10 + $0x4] sm:$0xf]
        %v392 = vld [vmem:[#allocation10 + $0x8] sm:$0xf]
        %v393 = vld [vmem:[#allocation10 + $0xc] sm:$0xf]
        %v394 = vld [vmem:[#allocation10 + $0x10] sm:$0xf]
        %v395 = vld [vmem:[#allocation10 + $0x14] sm:$0xf]
        %v396 = vld [vmem:[#allocation10 + $0x18] sm:$0xf]
        %v397 = vld [vmem:[#allocation10 + $0x1c] sm:$0xf]
        %v398 = vld [vmem:[#allocation10 + $0x20] sm:$0xf]
        %v399 = vld [vmem:[#allocation10 + $0x24] sm:$0xf]
        %v400 = vld [vmem:[#allocation10 + $0x28] sm:$0xf]
        %v401 = vld [vmem:[#allocation10 + $0x2c] sm:$0xf]
        %v402 = vld [vmem:[#allocation10 + $0x30] sm:$0xf]
        %v403 = vld [vmem:[#allocation10 + $0x34] sm:$0xf]
        %v404 = vld [vmem:[#allocation10 + $0x38] sm:$0xf]
        %v405 = vld [vmem:[#allocation10 + $0x3c] sm:$0xf]
        %v406 = vld [vmem:[%s314] sm:$0xff]
        %v407 = vld [vmem:[%s314 + $0x8] sm:$0xff]
        %v408 = vld [vmem:[%s314 + $0x10] sm:$0xff]
        %v409 = vld [vmem:[%s314 + $0x18] sm:$0xff]
        %v410 = vld [vmem:[%s314 + $0x20] sm:$0xff]
        %v411 = vld [vmem:[%s314 + $0x28] sm:$0xff]
        %v412 = vld [vmem:[%s314 + $0x30] sm:$0xff]
        %v413 = vld [vmem:[%s314 + $0x38] sm:$0xff]
        %v414 = vpack.c.bf16 %v407, %v406
        %v415 = vpack.c.bf16 %v409, %v408
        %v416 = vpack.c.bf16 %v411, %v410
        %v417 = vpack.c.bf16 %v413, %v412
        %v419 = vlaneseq
        %v420 = vshrl.u32 %v419, 7
        %v421 = vsub.s32 0, %v420
        %v422 = vrot.slane %v389, %v421
        %v428 = vunpack.c.l.b16 %v385
        %v429 = vunpack.c.l.b16 %v386
        %v430 = vunpack.c.l.b16 %v387
        %v431 = vunpack.c.l.b16 %v388
        %v432 = vpack.c.b16 %v429, %v428
        %v433 = vpack.c.b16 %v431, %v430
        %vm436 = vcmask 261120
        %v438 = vsel %vm436, %v414, 0
        %v441 = vsel %vm436, %v415, 0
        %v444 = vsel %vm436, %v416, 0
        %v447 = vsel %vm436, %v417, 0
        %449 = vmatprep.subr.bf16.mxu0 0
        %450 = vmatpush1.bf16.msra.mxu0 %v432
        %451 = vmatprep.subr.bf16.mxu0 0
        %452 = vmatpush1.bf16.msra.mxu0 %v433
        %453 = vmatprep.subr.bf16.mxu0 0
        %454 = vmatpush1.bf16.msra.mxu0 0
        %455 = vmatprep.subr.bf16.mxu0 0
        %456 = vmatpush1.bf16.msra.mxu0 0
        %457 = vmatprep.subr.bf16.mxu0 0
        %458 = vmatpush1.bf16.msra.mxu0 0
        %459 = vmatprep.subr.bf16.mxu0 0
        %460 = vmatpush1.bf16.msra.mxu0 0
        %461 = vmatprep.subr.bf16.mxu0 0
        %462 = vmatpush1.bf16.msra.mxu0 0
        %463 = vmatprep.subr.bf16.mxu0 0
        %464 = vmatpush1.bf16.msra.mxu0 0
        %465 = vmatprep.subr.bf16.mxu0 0
        %466 = vmatpush1.bf16.msra.mxu0 0
        %467 = vmatprep.subr.bf16.mxu0 0
        %468 = vmatpush1.bf16.msra.mxu0 0
        %469 = vmatprep.subr.bf16.mxu0 0
        %470 = vmatpush1.bf16.msra.mxu0 0
        %471 = vmatprep.subr.bf16.mxu0 0
        %472 = vmatpush1.bf16.msra.mxu0 0
        %473 = vmatprep.subr.bf16.mxu0 0
        %474 = vmatpush1.bf16.msra.mxu0 0
        %475 = vmatprep.subr.bf16.mxu0 0
        %476 = vmatpush1.bf16.msra.mxu0 0
        %477 = vmatprep.subr.bf16.mxu0 0
        %478 = vmatpush1.bf16.msra.mxu0 0
        %479 = vmatprep.subr.bf16.mxu0 0
        %480 = vmatpush1.bf16.msra.mxu0 0
        %481 = vmatprep.mubr.bf16.mxu0 0
        %482 = vmatmul.mubr.bf16.gmra.mrb[0].mxu0 %v438
        %v483 = vpop.f32.mrb[0].mxu0
        %v484 = vadd.f32 %v422, %v483
        %v485 = vpop.f32.mrb[0].mxu0
        %v486 = vpop.f32.mrb[0].mxu0
        %v487 = vadd.f32 %v422, %v486
        %v488 = vpop.f32.mrb[0].mxu0
        %489 = vmatprep.mubr.bf16.mxu0 0
        %490 = vmatmul.mubr.bf16.gmra.mrb[0].mxu0 %v441
        %v491 = vpop.f32.mrb[0].mxu0
        %v492 = vadd.f32 %v422, %v491
        %v493 = vpop.f32.mrb[0].mxu0
        %v494 = vpop.f32.mrb[0].mxu0
        %v495 = vadd.f32 %v422, %v494
        %v496 = vpop.f32.mrb[0].mxu0
        %497 = vmatprep.mubr.bf16.mxu0 0
        %498 = vmatmul.mubr.bf16.gmra.mrb[0].mxu0 %v444
        %v499 = vpop.f32.mrb[0].mxu0
        %v500 = vadd.f32 %v422, %v499
        %v501 = vpop.f32.mrb[0].mxu0
        %v502 = vpop.f32.mrb[0].mxu0
        %v503 = vadd.f32 %v422, %v502
        %v504 = vpop.f32.mrb[0].mxu0
        %505 = vmatprep.mubr.bf16.mxu0 0
        %506 = vmatmul.mubr.bf16.gmra.mrb[0].mxu0 %v447
        %v507 = vpop.f32.mrb[0].mxu0
        %v508 = vadd.f32 %v422, %v507
        %v509 = vpop.f32.mrb[0].mxu0
        %v510 = vpop.f32.mrb[0].mxu0
        %v511 = vadd.f32 %v422, %v510
        %v512 = vpop.f32.mrb[0].mxu0
        %513 = vdwg.mxu0
        %vm514 = vcmp.gt.f32.partialorder %v484, 0.0
        %vm515 = vcmp.gt.f32.partialorder %v487, 0.0
        %vm516 = vcmp.gt.f32.partialorder %v492, 0.0
        %vm517 = vcmp.gt.f32.partialorder %v495, 0.0
        %vm518 = vcmp.gt.f32.partialorder %v500, 0.0
        %vm519 = vcmp.gt.f32.partialorder %v503, 0.0
        %vm520 = vcmp.gt.f32.partialorder %v508, 0.0
        %vm521 = vcmp.gt.f32.partialorder %v511, 0.0
        %v522 = vstv %s384
        %v523 = vmul.f32 %v522, %v484
        %v524 = vmul.f32 %v522, %v487
        %v525 = vmul.f32 %v522, %v492
        %v526 = vmul.f32 %v522, %v495
        %v527 = vmul.f32 %v522, %v500
        %v528 = vmul.f32 %v522, %v503
        %v529 = vmul.f32 %v522, %v508
        %v530 = vmul.f32 %v522, %v511
        %v531 = vsel %vm514, %v484, %v523
        %v532 = vsel %vm515, %v487, %v524
        %v533 = vsel %vm516, %v492, %v525
        %v534 = vsel %vm517, %v495, %v526
        %v535 = vsel %vm518, %v500, %v527
        %v536 = vsel %vm519, %v503, %v528
        %v537 = vsel %vm520, %v508, %v529
        %v538 = vsel %vm521, %v511, %v530
        %v539 = vld [vmem:[#allocation2] sm:$0xff]
        %v540 = vld [vmem:[#allocation2 + $0x8] sm:$0xff]
        %v541 = vld [vmem:[#allocation2 + $0x10] sm:$0xff]
        %v542 = vld [vmem:[#allocation2 + $0x18] sm:$0xff]
        %v543 = vld [vmem:[#allocation2 + $0x20] sm:$0xff]
        %v544 = vld [vmem:[#allocation2 + $0x28] sm:$0xff]
        %v545 = vld [vmem:[#allocation2 + $0x30] sm:$0xff]
        %v546 = vld [vmem:[#allocation2 + $0x38] sm:$0xff]
        %v547 = vpack.c.bf16 %v532, %v531
        %v548 = vpack.c.bf16 %v534, %v533
        %v549 = vpack.c.bf16 %v536, %v535
        %v550 = vpack.c.bf16 %v538, %v537
        %v567 = vunpack.c.l.b16 %v390
        %v568 = vunpack.c.l.b16 %v391
        %v569 = vunpack.c.l.b16 %v392
        %v570 = vunpack.c.l.b16 %v393
        %v571 = vunpack.c.l.b16 %v394
        %v572 = vunpack.c.l.b16 %v395
        %v573 = vunpack.c.l.b16 %v396
        %v574 = vunpack.c.l.b16 %v397
        %v575 = vunpack.c.l.b16 %v398
        %v576 = vunpack.c.l.b16 %v399
        %v577 = vunpack.c.l.b16 %v400
        %v578 = vunpack.c.l.b16 %v401
        %v579 = vunpack.c.l.b16 %v402
        %v580 = vunpack.c.l.b16 %v403
        %v581 = vunpack.c.l.b16 %v404
        %v582 = vunpack.c.l.b16 %v405
        %v583 = vpack.c.b16 %v568, %v567
        %v584 = vpack.c.b16 %v570, %v569
        %v585 = vpack.c.b16 %v572, %v571
        %v586 = vpack.c.b16 %v574, %v573
        %v587 = vpack.c.b16 %v576, %v575
        %v588 = vpack.c.b16 %v578, %v577
        %v589 = vpack.c.b16 %v580, %v579
        %v590 = vpack.c.b16 %v582, %v581
        %599 = vmatprep.subr.bf16.mxu0 0
        %600 = vmatpush1.bf16.msra.mxu0 %v583
        %601 = vmatprep.subr.bf16.mxu0 0
        %602 = vmatpush1.bf16.msra.mxu0 %v584
        %603 = vmatprep.subr.bf16.mxu0 0
        %604 = vmatpush1.bf16.msra.mxu0 %v585
        %605 = vmatprep.subr.bf16.mxu0 0
        %606 = vmatpush1.bf16.msra.mxu0 %v586
        %607 = vmatprep.subr.bf16.mxu0 0
        %608 = vmatpush1.bf16.msra.mxu0 %v587
        %609 = vmatprep.subr.bf16.mxu0 0
        %610 = vmatpush1.bf16.msra.mxu0 %v588
        %611 = vmatprep.subr.bf16.mxu0 0
        %612 = vmatpush1.bf16.msra.mxu0 %v589
        %613 = vmatprep.subr.bf16.mxu0 0
        %614 = vmatpush1.bf16.msra.mxu0 %v590
        %615 = vmatprep.subr.bf16.mxu0 0
        %616 = vmatpush1.bf16.msra.mxu0 0
        %617 = vmatprep.subr.bf16.mxu0 0
        %618 = vmatpush1.bf16.msra.mxu0 0
        %619 = vmatprep.subr.bf16.mxu0 0
        %620 = vmatpush1.bf16.msra.mxu0 0
        %621 = vmatprep.subr.bf16.mxu0 0
        %622 = vmatpush1.bf16.msra.mxu0 0
        %623 = vmatprep.subr.bf16.mxu0 0
        %624 = vmatpush1.bf16.msra.mxu0 0
        %625 = vmatprep.subr.bf16.mxu0 0
        %626 = vmatpush1.bf16.msra.mxu0 0
        %627 = vmatprep.subr.bf16.mxu0 0
        %628 = vmatpush1.bf16.msra.mxu0 0
        %629 = vmatprep.subr.bf16.mxu0 0
        %630 = vmatpush1.bf16.msra.mxu0 0
        %631 = vmatprep.mubr.bf16.mxu0 0
        %632 = vmatmul.mubr.bf16.gmra.mrb[0].mxu0 %v547
        %v633 = vpop.f32.mrb[0].mxu0
        %v634 = vadd.f32 0.0, %v633
        %v635 = vpop.f32.mrb[0].mxu0
        %v636 = vpop.f32.mrb[0].mxu0
        %v637 = vadd.f32 0.0, %v636
        %v638 = vpop.f32.mrb[0].mxu0
        %639 = vmatprep.mubr.bf16.mxu0 0
        %640 = vmatmul.mubr.bf16.gmra.mrb[0].mxu0 %v548
        %v641 = vpop.f32.mrb[0].mxu0
        %v642 = vadd.f32 0.0, %v641
        %v643 = vpop.f32.mrb[0].mxu0
        %v644 = vpop.f32.mrb[0].mxu0
        %v645 = vadd.f32 0.0, %v644
        %v646 = vpop.f32.mrb[0].mxu0
        %647 = vmatprep.mubr.bf16.mxu0 0
        %648 = vmatmul.mubr.bf16.gmra.mrb[0].mxu0 %v549
        %v649 = vpop.f32.mrb[0].mxu0
        %v650 = vadd.f32 0.0, %v649
        %v651 = vpop.f32.mrb[0].mxu0
        %v652 = vpop.f32.mrb[0].mxu0
        %v653 = vadd.f32 0.0, %v652
        %v654 = vpop.f32.mrb[0].mxu0
        %655 = vmatprep.mubr.bf16.mxu0 0
        %656 = vmatmul.mubr.bf16.gmra.mrb[0].mxu0 %v550
        %v657 = vpop.f32.mrb[0].mxu0
        %v658 = vadd.f32 0.0, %v657
        %v659 = vpop.f32.mrb[0].mxu0
        %v660 = vpop.f32.mrb[0].mxu0
        %v661 = vadd.f32 0.0, %v660
        %v662 = vpop.f32.mrb[0].mxu0
        %663 = vdwg.mxu0
        %v664 = vadd.f32 %v539, %v634
        %v665 = vadd.f32 %v540, %v637
        %v666 = vadd.f32 %v541, %v642
        %v667 = vadd.f32 %v542, %v645
        %v668 = vadd.f32 %v543, %v650
        %v669 = vadd.f32 %v544, %v653
        %v670 = vadd.f32 %v545, %v658
        %v671 = vadd.f32 %v546, %v661
        %vm672 = vcmask 130048
        %673 = vst.msk [vmem:[#allocation2] sm:$0xff] %vm672, %v664
        %674 = vst.msk [vmem:[#allocation2 + $0x8] sm:$0xff] %vm672, %v665
        %675 = vst.msk [vmem:[#allocation2 + $0x10] sm:$0xff] %vm672, %v666
        %676 = vst.msk [vmem:[#allocation2 + $0x18] sm:$0xff] %vm672, %v667
        %677 = vst.msk [vmem:[#allocation2 + $0x20] sm:$0xff] %vm672, %v668
        %678 = vst.msk [vmem:[#allocation2 + $0x28] sm:$0xff] %vm672, %v669
        %679 = vst.msk [vmem:[#allocation2 + $0x30] sm:$0xff] %vm672, %v670
        %680 = vst.msk [vmem:[#allocation2 + $0x38] sm:$0xff] %vm672, %v671
        %s681 = scalar_lea.vmem %s314, 64 [#allocation4]
        %v682 = vld [vmem:[%s681] sm:$0xff]
        %v683 = vld [vmem:[%s681 + $0x8] sm:$0xff]
        %v684 = vld [vmem:[%s681 + $0x10] sm:$0xff]
        %v685 = vld [vmem:[%s681 + $0x18] sm:$0xff]
        %v686 = vld [vmem:[%s681 + $0x20] sm:$0xff]
        %v687 = vld [vmem:[%s681 + $0x28] sm:$0xff]
        %v688 = vld [vmem:[%s681 + $0x30] sm:$0xff]
        %v689 = vld [vmem:[%s681 + $0x38] sm:$0xff]
        %v690 = vpack.c.bf16 %v683, %v682
        %v691 = vpack.c.bf16 %v685, %v684
        %v692 = vpack.c.bf16 %v687, %v686
        %v693 = vpack.c.bf16 %v689, %v688
        %v695 = vsel %vm436, %v690, 0
        %v698 = vsel %vm436, %v691, 0
        %v701 = vsel %vm436, %v692, 0
        %v704 = vsel %vm436, %v693, 0
        %706 = vmatprep.subr.bf16.mxu0 0
        %707 = vmatpush1.bf16.msra.mxu0 %v432
        %708 = vmatprep.subr.bf16.mxu0 0
        %709 = vmatpush1.bf16.msra.mxu0 %v433
        %710 = vmatprep.subr.bf16.mxu0 0
        %711 = vmatpush1.bf16.msra.mxu0 0
        %712 = vmatprep.subr.bf16.mxu0 0
        %713 = vmatpush1.bf16.msra.mxu0 0
        %714 = vmatprep.subr.bf16.mxu0 0
        %715 = vmatpush1.bf16.msra.mxu0 0
        %716 = vmatprep.subr.bf16.mxu0 0
        %717 = vmatpush1.bf16.msra.mxu0 0
        %718 = vmatprep.subr.bf16.mxu0 0
        %719 = vmatpush1.bf16.msra.mxu0 0
        %720 = vmatprep.subr.bf16.mxu0 0
        %721 = vmatpush1.bf16.msra.mxu0 0
        %722 = vmatprep.subr.bf16.mxu0 0
        %723 = vmatpush1.bf16.msra.mxu0 0
        %724 = vmatprep.subr.bf16.mxu0 0
        %725 = vmatpush1.bf16.msra.mxu0 0
        %726 = vmatprep.subr.bf16.mxu0 0
        %727 = vmatpush1.bf16.msra.mxu0 0
        %728 = vmatprep.subr.bf16.mxu0 0
        %729 = vmatpush1.bf16.msra.mxu0 0
        %730 = vmatprep.subr.bf16.mxu0 0
        %731 = vmatpush1.bf16.msra.mxu0 0
        %732 = vmatprep.subr.bf16.mxu0 0
        %733 = vmatpush1.bf16.msra.mxu0 0
        %734 = vmatprep.subr.bf16.mxu0 0
        %735 = vmatpush1.bf16.msra.mxu0 0
        %736 = vmatprep.subr.bf16.mxu0 0
        %737 = vmatpush1.bf16.msra.mxu0 0
        %738 = vmatprep.mubr.bf16.mxu0 0
        %739 = vmatmul.mubr.bf16.gmra.mrb[0].mxu0 %v695
        %v740 = vpop.f32.mrb[0].mxu0
        %v741 = vadd.f32 %v422, %v740
        %v742 = vpop.f32.mrb[0].mxu0
        %v743 = vpop.f32.mrb[0].mxu0
        %v744 = vadd.f32 %v422, %v743
        %v745 = vpop.f32.mrb[0].mxu0
        %746 = vmatprep.mubr.bf16.mxu0 0
        %747 = vmatmul.mubr.bf16.gmra.mrb[0].mxu0 %v698
        %v748 = vpop.f32.mrb[0].mxu0
        %v749 = vadd.f32 %v422, %v748
        %v750 = vpop.f32.mrb[0].mxu0
        %v751 = vpop.f32.mrb[0].mxu0
        %v752 = vadd.f32 %v422, %v751
        %v753 = vpop.f32.mrb[0].mxu0
        %754 = vmatprep.mubr.bf16.mxu0 0
        %755 = vmatmul.mubr.bf16.gmra.mrb[0].mxu0 %v701
        %v756 = vpop.f32.mrb[0].mxu0
        %v757 = vadd.f32 %v422, %v756
        %v758 = vpop.f32.mrb[0].mxu0
        %v759 = vpop.f32.mrb[0].mxu0
        %v760 = vadd.f32 %v422, %v759
        %v761 = vpop.f32.mrb[0].mxu0
        %762 = vmatprep.mubr.bf16.mxu0 0
        %763 = vmatmul.mubr.bf16.gmra.mrb[0].mxu0 %v704
        %v764 = vpop.f32.mrb[0].mxu0
        %v765 = vadd.f32 %v422, %v764
        %v766 = vpop.f32.mrb[0].mxu0
        %v767 = vpop.f32.mrb[0].mxu0
        %v768 = vadd.f32 %v422, %v767
        %v769 = vpop.f32.mrb[0].mxu0
        %770 = vdwg.mxu0
        %vm771 = vcmp.gt.f32.partialorder %v741, 0.0
        %vm772 = vcmp.gt.f32.partialorder %v744, 0.0
        %vm773 = vcmp.gt.f32.partialorder %v749, 0.0
        %vm774 = vcmp.gt.f32.partialorder %v752, 0.0
        %vm775 = vcmp.gt.f32.partialorder %v757, 0.0
        %vm776 = vcmp.gt.f32.partialorder %v760, 0.0
        %vm777 = vcmp.gt.f32.partialorder %v765, 0.0
        %vm778 = vcmp.gt.f32.partialorder %v768, 0.0
        %v779 = vmul.f32 %v522, %v741
        %v780 = vmul.f32 %v522, %v744
        %v781 = vmul.f32 %v522, %v749
        %v782 = vmul.f32 %v522, %v752
        %v783 = vmul.f32 %v522, %v757
        %v784 = vmul.f32 %v522, %v760
        %v785 = vmul.f32 %v522, %v765
        %v786 = vmul.f32 %v522, %v768
        %v787 = vsel %vm771, %v741, %v779
        %v788 = vsel %vm772, %v744, %v780
        %v789 = vsel %vm773, %v749, %v781
        %v790 = vsel %vm774, %v752, %v782
        %v791 = vsel %vm775, %v757, %v783
        %v792 = vsel %vm776, %v760, %v784
        %v793 = vsel %vm777, %v765, %v785
        %v794 = vsel %vm778, %v768, %v786
        %s795 = scalar_lea.vmem [#allocation2], 64
        %v796 = vld [vmem:[%s795] sm:$0xff]
        %v797 = vld [vmem:[%s795 + $0x8] sm:$0xff]
        %v798 = vld [vmem:[%s795 + $0x10] sm:$0xff]
        %v799 = vld [vmem:[%s795 + $0x18] sm:$0xff]
        %v800 = vld [vmem:[%s795 + $0x20] sm:$0xff]
        %v801 = vld [vmem:[%s795 + $0x28] sm:$0xff]
        %v802 = vld [vmem:[%s795 + $0x30] sm:$0xff]
        %v803 = vld [vmem:[%s795 + $0x38] sm:$0xff]
        %v804 = vpack.c.bf16 %v788, %v787
        %v805 = vpack.c.bf16 %v790, %v789
        %v806 = vpack.c.bf16 %v792, %v791
        %v807 = vpack.c.bf16 %v794, %v793
        %808 = vmatprep.subr.bf16.mxu0 0
        %809 = vmatpush1.bf16.msra.mxu0 %v583
        %810 = vmatprep.subr.bf16.mxu0 0
        %811 = vmatpush1.bf16.msra.mxu0 %v584
        %812 = vmatprep.subr.bf16.mxu0 0
        %813 = vmatpush1.bf16.msra.mxu0 %v585
        %814 = vmatprep.subr.bf16.mxu0 0
        %815 = vmatpush1.bf16.msra.mxu0 %v586
        %816 = vmatprep.subr.bf16.mxu0 0
        %817 = vmatpush1.bf16.msra.mxu0 %v587
        %818 = vmatprep.subr.bf16.mxu0 0
        %819 = vmatpush1.bf16.msra.mxu0 %v588
        %820 = vmatprep.subr.bf16.mxu0 0
        %821 = vmatpush1.bf16.msra.mxu0 %v589
        %822 = vmatprep.subr.bf16.mxu0 0
        %823 = vmatpush1.bf16.msra.mxu0 %v590
        %824 = vmatprep.subr.bf16.mxu0 0
        %825 = vmatpush1.bf16.msra.mxu0 0
        %826 = vmatprep.subr.bf16.mxu0 0
        %827 = vmatpush1.bf16.msra.mxu0 0
        %828 = vmatprep.subr.bf16.mxu0 0
        %829 = vmatpush1.bf16.msra.mxu0 0
        %830 = vmatprep.subr.bf16.mxu0 0
        %831 = vmatpush1.bf16.msra.mxu0 0
        %832 = vmatprep.subr.bf16.mxu0 0
        %833 = vmatpush1.bf16.msra.mxu0 0
        %834 = vmatprep.subr.bf16.mxu0 0
        %835 = vmatpush1.bf16.msra.mxu0 0
        %836 = vmatprep.subr.bf16.mxu0 0
        %837 = vmatpush1.bf16.msra.mxu0 0
        %838 = vmatprep.subr.bf16.mxu0 0
        %839 = vmatpush1.bf16.msra.mxu0 0
        %840 = vmatprep.mubr.bf16.mxu0 0
        %841 = vmatmul.mubr.bf16.gmra.mrb[0].mxu0 %v804
        %v842 = vpop.f32.mrb[0].mxu0
        %v843 = vadd.f32 0.0, %v842
        %v844 = vpop.f32.mrb[0].mxu0
        %v845 = vpop.f32.mrb[0].mxu0
        %v846 = vadd.f32 0.0, %v845
        %v847 = vpop.f32.mrb[0].mxu0
        %848 = vmatprep.mubr.bf16.mxu0 0
        %849 = vmatmul.mubr.bf16.gmra.mrb[0].mxu0 %v805
        %v850 = vpop.f32.mrb[0].mxu0
        %v851 = vadd.f32 0.0, %v850
        %v852 = vpop.f32.mrb[0].mxu0
        %v853 = vpop.f32.mrb[0].mxu0
        %v854 = vadd.f32 0.0, %v853
        %v855 = vpop.f32.mrb[0].mxu0
        %856 = vmatprep.mubr.bf16.mxu0 0
        %857 = vmatmul.mubr.bf16.gmra.mrb[0].mxu0 %v806
        %v858 = vpop.f32.mrb[0].mxu0
        %v859 = vadd.f32 0.0, %v858
        %v860 = vpop.f32.mrb[0].mxu0
        %v861 = vpop.f32.mrb[0].mxu0
        %v862 = vadd.f32 0.0, %v861
        %v863 = vpop.f32.mrb[0].mxu0
        %864 = vmatprep.mubr.bf16.mxu0 0
        %865 = vmatmul.mubr.bf16.gmra.mrb[0].mxu0 %v807
        %v866 = vpop.f32.mrb[0].mxu0
        %v867 = vadd.f32 0.0, %v866
        %v868 = vpop.f32.mrb[0].mxu0
        %v869 = vpop.f32.mrb[0].mxu0
        %v870 = vadd.f32 0.0, %v869
        %v871 = vpop.f32.mrb[0].mxu0
        %872 = vdwg.mxu0
        %v873 = vadd.f32 %v796, %v843
        %v874 = vadd.f32 %v797, %v846
        %v875 = vadd.f32 %v798, %v851
        %v876 = vadd.f32 %v799, %v854
        %v877 = vadd.f32 %v800, %v859
        %v878 = vadd.f32 %v801, %v862
        %v879 = vadd.f32 %v802, %v867
        %v880 = vadd.f32 %v803, %v870
        %881 = vst.msk [vmem:[%s795] sm:$0xff] %vm672, %v873
        %882 = vst.msk [vmem:[%s795 + $0x8] sm:$0xff] %vm672, %v874
        %883 = vst.msk [vmem:[%s795 + $0x10] sm:$0xff] %vm672, %v875
        %884 = vst.msk [vmem:[%s795 + $0x18] sm:$0xff] %vm672, %v876
        %885 = vst.msk [vmem:[%s795 + $0x20] sm:$0xff] %vm672, %v877
        %886 = vst.msk [vmem:[%s795 + $0x28] sm:$0xff] %vm672, %v878
        %887 = vst.msk [vmem:[%s795 + $0x30] sm:$0xff] %vm672, %v879
        %888 = vst.msk [vmem:[%s795 + $0x38] sm:$0xff] %vm672, %v880
        // Predicated region
        $region69: #{tpu_custom_call.1} parent=43 // pred_check
          %p889 = pneg %p363
        $region70: #{tpu_custom_call.1} parent=43 // pred_check_branch
          %891 = sbr.rel (%p889) target = $region72
        $region71: #{tpu_custom_call.1} parent=43 // pred_region
          %v892 = vld [vmem:[#allocation2] sm:$0xff]
          %v893 = vld [vmem:[#allocation2 + $0x8] sm:$0xff]
          %v894 = vld [vmem:[#allocation2 + $0x10] sm:$0xff]
          %v895 = vld [vmem:[#allocation2 + $0x18] sm:$0xff]
          %v896 = vld [vmem:[#allocation2 + $0x20] sm:$0xff]
          %v897 = vld [vmem:[#allocation2 + $0x28] sm:$0xff]
          %v898 = vld [vmem:[#allocation2 + $0x30] sm:$0xff]
          %v899 = vld [vmem:[#allocation2 + $0x38] sm:$0xff]
          %v900 = vld [vmem:[#allocation2 + $0x40] sm:$0xff]
          %v901 = vld [vmem:[#allocation2 + $0x48] sm:$0xff]
          %v902 = vld [vmem:[#allocation2 + $0x50] sm:$0xff]
          %v903 = vld [vmem:[#allocation2 + $0x58] sm:$0xff]
          %v904 = vld [vmem:[#allocation2 + $0x60] sm:$0xff]
          %v905 = vld [vmem:[#allocation2 + $0x68] sm:$0xff]
          %v906 = vld [vmem:[#allocation2 + $0x70] sm:$0xff]
          %v907 = vld [vmem:[#allocation2 + $0x78] sm:$0xff]
          %v908 = vld [vmem:[#allocation12] sm:$0x1]
          %v910 = vlaneseq
          %v911 = vshrl.u32 %v910, 7
          %v912 = vsub.s32 0, %v911
          %v913 = vrot.slane %v908, %v912
          %v915 = vadd.f32 %v892, %v913
          %v916 = vadd.f32 %v893, %v913
          %v917 = vadd.f32 %v894, %v913
          %v918 = vadd.f32 %v895, %v913
          %v919 = vadd.f32 %v896, %v913
          %v920 = vadd.f32 %v897, %v913
          %v921 = vadd.f32 %v898, %v913
          %v922 = vadd.f32 %v899, %v913
          %v923 = vadd.f32 %v900, %v913
          %v924 = vadd.f32 %v901, %v913
          %v925 = vadd.f32 %v902, %v913
          %v926 = vadd.f32 %v903, %v913
          %v927 = vadd.f32 %v904, %v913
          %v928 = vadd.f32 %v905, %v913
          %v929 = vadd.f32 %v906, %v913
          %v930 = vadd.f32 %v907, %v913
          %931 = vst.msk [vmem:[%s358] sm:$0xff] %vm672, %v915
          %932 = vst.msk [vmem:[%s358 + $0x8] sm:$0xff] %vm672, %v916
          %933 = vst.msk [vmem:[%s358 + $0x10] sm:$0xff] %vm672, %v917
          %934 = vst.msk [vmem:[%s358 + $0x18] sm:$0xff] %vm672, %v918
          %935 = vst.msk [vmem:[%s358 + $0x20] sm:$0xff] %vm672, %v919
          %936 = vst.msk [vmem:[%s358 + $0x28] sm:$0xff] %vm672, %v920
          %937 = vst.msk [vmem:[%s358 + $0x30] sm:$0xff] %vm672, %v921
          %938 = vst.msk [vmem:[%s358 + $0x38] sm:$0xff] %vm672, %v922
          %939 = vst.msk [vmem:[%s358 + $0x40] sm:$0xff] %vm672, %v923
          %940 = vst.msk [vmem:[%s358 + $0x48] sm:$0xff] %vm672, %v924
          %941 = vst.msk [vmem:[%s358 + $0x50] sm:$0xff] %vm672, %v925
          %942 = vst.msk [vmem:[%s358 + $0x58] sm:$0xff] %vm672, %v926
          %943 = vst.msk [vmem:[%s358 + $0x60] sm:$0xff] %vm672, %v927
          %944 = vst.msk [vmem:[%s358 + $0x68] sm:$0xff] %vm672, %v928
          %945 = vst.msk [vmem:[%s358 + $0x70] sm:$0xff] %vm672, %v929
          %946 = vst.msk [vmem:[%s358 + $0x78] sm:$0xff] %vm672, %v930
        $region72: #{tpu_custom_call.1} parent=43 // pred_fallthru
          _
        %s947 = sand.u32 %s192, 1
        %s948 = scalar_lea.sflag [#allocation6], %s947
        %s949 = sand.u32 %s192, 1
        %s950 = smul.addr %s949, 128
        %s951 = scalar_lea.vmem [#allocation13], %s950
        // Predicated region
        $region73: #{tpu_custom_call.1} parent=43 // pred_check
          %p952 = pneg %p202
        $region74: #{tpu_custom_call.1} parent=43 // pred_check_branch
          %954 = sbr.rel (%p952) target = $region76
        $region75: #{tpu_custom_call.1} parent=43 // pred_region
          %s955 = smul.u32 16, %s30
          %s957 = ssub.s32 2048, 2048
          %958 = vsyncadd %s948, %s957
          %s959 = smul.addr %s955, 128
          %s960 = scalar_lea.hbm %s6, %s959
          %s961 = sshll.u32 %s951, 4
          %s962 = int_to_ptr.vmem [resolvable:$true] %s961
          %967 = dma.vmem_to_hbm [thread:$0]  %s962, 2048, %s960, %s948, 128, 128, 8
        $region76: #{tpu_custom_call.1} parent=43 // pred_fallthru
          _
      $region44: #{tpu_custom_call.1} parent=5 // pred_fallthru
        _
      %p968 = scmp.le.s32.totalorder 2, %s21
      // Predicated region
      $region77: #{tpu_custom_call.1} parent=5 // pred_check
        %p969 = pneg %p968
      $region78: #{tpu_custom_call.1} parent=5 // pred_check_branch
        %971 = sbr.rel (%p969) target = $region80
      $region79: #{tpu_custom_call.1} parent=5 // pred_region
        %s972 = ssub.s32 %s21, 2
        // Predicated region
        $region81: #{tpu_custom_call.1} parent=79 // pred_check
          %p973 = pneg %p208
        $region82: #{tpu_custom_call.1} parent=79 // pred_check_branch
          %975 = sbr.rel (%p973) target = $region84
        $region83: #{tpu_custom_call.1} parent=79 // pred_region
          %s976 = sand.u32 %s193, 1
          %s977 = scalar_lea.sflag [#allocation6], %s976
          %s978 = sand.u32 %s193, 1
          %s979 = smul.addr %s978, 128
          %s980 = scalar_lea.vmem [#allocation13], %s979
          %981 = dma.done %s977, 2048
        $region84: #{tpu_custom_call.1} parent=79 // pred_fallthru
          _
      $region80: #{tpu_custom_call.1} parent=5 // pred_fallthru
        _
    $region6: #{tpu_custom_call.1} parent=1 // loop_footer
      %s25 = sadd.s32 1, %s21
    $region7: #{tpu_custom_call.1} parent=1 // loop_footer_branch
      %20 = sbr.rel target = $region3
    $region8: #{tpu_custom_call.1} parent=1 // loop_exit
      _
    %982 = vsyncpa [#allocation5], 1
    %s983 = scalar_lea.sflag [#allocation5], 1
    %984 = vsyncpa %s983, 1
    %985 = vsyncpa [#allocation8], 1
    %986 = vsyncpa [#allocation11], 1
    %987 = vsyncpa [#allocation6], 1
    %s988 = scalar_lea.sflag [#allocation6], 1
    %989 = vsyncpa %s988, 1

</llo_original>
